<compile_context>
chip_gen: v7x
topology: tpu7x:2x2x1
jax: 0.10.0
libtpu: 0.0.40
codegen_flags: <defaults>
</compile_context>

<pallas_src>
import functools

import jax
import jax.numpy as jnp
from jax import lax
from jax.experimental import pallas as pl
from jax.experimental.pallas import tpu as pltpu


# --------------------------------------------------------------------------- #
# Kernel body
# --------------------------------------------------------------------------- #
def _head_eeg_kernel(x_ref, w_ref, b_ref, out_ref, pooled_ref, acc_ref, *, inv_l):
    """One (batch-tile, L-tile) grid step.

    x_ref:      (TB, TL, C)   input tile
    w_ref:      (C, O)        fc weight, pre-transposed in the wrapper
    b_ref:      (1, O)        fc bias
    out_ref:    (TB, O)       logits      (resident across the L grid axis)
    pooled_ref: (TB, C)       pooled feat (resident across the L grid axis)
    acc_ref:    (TB, C) f32   VMEM scratch accumulator
    """
    l = pl.program_id(1)

    # Partial sum over this L tile in f32; the VALU work hides under the x DMA.
    partial = jnp.sum(x_ref[...].astype(jnp.float32), axis=1)

    @pl.when(l == 0)
    def _first():
        # Write-on-first-step: no separate zero-init pass over the accumulator.
        acc_ref[...] = partial

    @pl.when(l > 0)
    def _rest():
        acc_ref[...] += partial

    @pl.when(l == pl.num_programs(1) - 1)
    def _finalize():
        pooled = acc_ref[...] * inv_l                     # mean over L (f32)
        w = w_ref[...]                                    # native dtype -> MXU
        lhs = pooled if w_ref.dtype == jnp.float32 else pooled.astype(w_ref.dtype)
        out = lax.dot_general(lhs, w, (((1,), (0,)), ((), ())),
                              preferred_element_type=jnp.float32)
        out = out + b_ref[...].astype(jnp.float32)        # broadcast (1, O)
        out_ref[...] = out.astype(out_ref.dtype)
        pooled_ref[...] = pooled.astype(pooled_ref.dtype)


# --------------------------------------------------------------------------- #
# Tile / VMEM sizing helpers (all static / trace-time Python)
# --------------------------------------------------------------------------- #
def _divisors(n):
    out = set()
    i = 1
    while i * i <= n:
        if n % i == 0:
            out.add(i)
            out.add(n // i)
        i += 1
    return out


def _vmem_budget_bytes():
    """Generation-aware usable VMEM (leave headroom for Mosaic scratch)."""
    cap = 128 * 1024 * 1024
    try:
        info = pltpu.get_tpu_info()
        cap = int(getattr(info, "vmem_capacity_bytes", cap))
    except Exception:
        pass
    # v7x: 64 MiB physical -> ~48 MiB usable.  v5e/v6e: 128 MiB -> cap at 96 MiB.
    return int(min(max(cap - 16 * 1024 * 1024, 16 * 1024 * 1024),
                   96 * 1024 * 1024))


def _choose_tiles(B, L, C, itemsize, cap_bytes):
    """TL-first tile selection under a per-step byte cap.

    Returns (TB, TL, sublane_multiple).  Block legality: the x block's trailing
    dims are (TL, C) with C always full, so TL must be a multiple of the
    dtype-aware sublane count or equal L; TB (trailing dim of the (TB, O) /
    (TB, C) output blocks) must be a multiple of it or equal B.
    """
    sub = max(8, 32 // max(1, itemsize))   # 8 f32, 16 bf16, 32 int8/fp8

    tb_cands = sorted({d for d in _divisors(B) if d % sub == 0} | {B}, reverse=True)
    tl_cands = sorted({d for d in _divisors(L) if d % sub == 0} | {L}, reverse=True)
    min_tb = tb_cands[-1]

    # 1) Largest TL (long contiguous DMA segments; TL == L removes revisits).
    tl = tl_cands[-1]
    for cand in tl_cands:
        if min_tb * cand * C * itemsize <= cap_bytes:
            tl = cand
            break

    # 2) Largest TB that still fits the cap with that TL.
    tb = min_tb
    for cand in tb_cands:
        if cand * tl * C * itemsize <= cap_bytes:
            tb = cand
            break

    # 3) Ensure >=2 batch blocks when possible so v7x can shard across its two
    #    TensorCores (negligible extra grid-step overhead on single-TC chips).
    if B // tb < 2:
        for cand in tb_cands:
            if cand < tb and B // cand >= 2:
                tb = cand
                break

    return tb, tl, sub


def _validate_vmem(tb, tl, C, O, x_itemsize, w_itemsize, vmem_limit):
    est = (2 * tb * tl * C * x_itemsize          # x tile, double-buffered
           + 2 * (C * O + O) * w_itemsize        # weight + bias, double-buffered
           + 2 * tb * (O + C) * x_itemsize       # out + pooled blocks
           + tb * C * 4)                         # f32 accumulator scratch
    if est > vmem_limit:
        raise ValueError(
            f"HeadEEG Pallas tile (TB={tb}, TL={tl}, C={C}) needs ~{est} bytes "
            f"of VMEM, exceeding the limit of {vmem_limit} bytes. "
            f"Pass a smaller tile_l or pad L to a sublane multiple.")


# --------------------------------------------------------------------------- #
# Wrapper
# --------------------------------------------------------------------------- #
@functools.partial(jax.jit, static_argnames=("tile_l",))
def head_eeg_forward(x_eeg, x_hyp, t, w, b, tile_l=None):
    """Pallas implementation of HeadEEG.forward.

    x_eeg: (B, L, C)
    w:     (O, C)    (torch nn.Linear weight layout)
    b:     (O,)
    x_hyp, t: unused (kept for signature fidelity with the PyTorch module).
    tile_l: optional static override of the L tile (testing / tuning).
    """
    del x_hyp, t
    B, L, C = x_eeg.shape
    O = w.shape[0]
    x_itemsize = jnp.dtype(x_eeg.dtype).itemsize
    w_itemsize = jnp.dtype(w.dtype).itemsize

    # VMEM budget -> per-step x-tile cap (double-buffered, with slack for the
    # weight/bias/output/accumulator residents and Mosaic-internal scratch).
    vmem_limit = _vmem_budget_bytes()
    resident = 2 * (C * O + O) * w_itemsize + 4 * 1024 * 1024   # w/b + out/pooled/acc
    slack = 2 * 1024 * 1024
    cap_bytes = max((vmem_limit - resident - slack) // 2, 1 * 1024 * 1024)

    tb, tl, sub = _choose_tiles(B, L, C, x_itemsize, cap_bytes)
    if tile_l is not None:
        if L % tile_l != 0:
            raise ValueError(f"tile_l={tile_l} must divide L={L}")
        if tile_l % sub != 0 and tile_l != L:
            raise ValueError(f"tile_l={tile_l} must be a multiple of {sub} or == L")
        tl = tile_l
    assert B % tb == 0 and L % tl == 0, (B, L, tb, tl)
    _validate_vmem(tb, tl, C, O, x_itemsize, w_itemsize, vmem_limit)

    w_t = jnp.transpose(w)      # (C, O): transpose once, outside the kernel
    b2 = b.reshape(1, O)

    grid = (B // tb, L // tl)
    kernel = functools.partial(_head_eeg_kernel, inv_l=1.0 / float(L))

    cost = pl.CostEstimate(
        flops=int(B * L * C + 2 * B * C * O),
        transcendentals=0,
        bytes_accessed=int(B * L * C * x_itemsize
                           + (C * O + O) * w_itemsize
                           + (B * O + B * C) * x_itemsize),
    )

    out_eeg, pooled = pl.pallas_call(
        kernel,
        out_shape=(
            jax.ShapeDtypeStruct((B, O), x_eeg.dtype),
            jax.ShapeDtypeStruct((B, C), x_eeg.dtype),
        ),
        grid_spec=pltpu.PrefetchScalarGridSpec(
            num_scalar_prefetch=0,
            grid=grid,
            in_specs=[
                pl.BlockSpec((tb, tl, C), lambda i, l: (i, l, 0)),
                pl.BlockSpec((C, O), lambda i, l: (0, 0)),
                pl.BlockSpec((1, O), lambda i, l: (0, 0)),
            ],
            out_specs=(
                pl.BlockSpec((tb, O), lambda i, l: (i, 0)),
                pl.BlockSpec((tb, C), lambda i, l: (i, 0)),
            ),
            scratch_shapes=[pltpu.VMEM((tb, C), jnp.float32)],
        ),
        compiler_params=pltpu.CompilerParams(
            dimension_semantics=("parallel", "arbitrary"),
            vmem_limit_bytes=vmem_limit,
        ),
        cost_estimate=cost,
    )(x_eeg, w_t, b2)
    # TODO(synk): .detach().clone() of the pooled features has no autodiff
    # meaning in this forward-only kernel; the pooled output is simply returned.
    return out_eeg, pooled


def _reference(x_eeg, w, b):
    pooled = jnp.mean(x_eeg.astype(jnp.float32), axis=1)
    out = pooled @ w.astype(jnp.float32).T + b.astype(jnp.float32)[None, :]
    return out.astype(x_eeg.dtype), pooled.astype(x_eeg.dtype)


if __name__ == "__main__":
    key = jax.random.PRNGKey(0)
    k1, k2, k3, k4, k5, k6 = jax.random.split(key, 6)

    # ----- Branch 1: cfg.criterion == 'DecadeCE'  (Linear(EMBED_DIM, OUT_CHANS)) -----
    B, L, EMBED_DIM, OUT_CHANS = 2, 8, 32, 8
    x_eeg = jax.random.normal(k1, (B, L, EMBED_DIM), dtype=jnp.float32)
    x_hyp = jax.random.normal(k2, (B, L, EMBED_DIM), dtype=jnp.float32)  # unused
    t = jnp.zeros((B,), dtype=jnp.float32)                               # unused
    w_dce = jax.random.normal(k3, (OUT_CHANS, EMBED_DIM), dtype=jnp.float32) * 0.05
    b_dce = jax.random.normal(k4, (OUT_CHANS,), dtype=jnp.float32) * 0.05

    out1, feat1 = head_eeg_forward(x_eeg, x_hyp, t, w_dce, b_dce)
    out1 = jax.block_until_ready(out1)
    feat1 = jax.block_until_ready(feat1)
    ref_out1, ref_feat1 = _reference(x_eeg, w_dce, b_dce)
    assert out1.shape == (B, OUT_CHANS) and feat1.shape == (B, EMBED_DIM)
    assert jnp.allclose(out1, ref_out1, atol=1e-5, rtol=1e-5)
    assert jnp.allclose(feat1, ref_feat1, atol=1e-5, rtol=1e-5)

    # ----- Branch 2: else  (Linear(OUT_CHANS, 1), bias initialized to 50.0) -----
    x_eeg2 = jax.random.normal(k5, (B, L, OUT_CHANS), dtype=jnp.float32)
    w_reg = jax.random.normal(k3, (1, OUT_CHANS), dtype=jnp.float32) * 0.05
    b_reg = jnp.array([50.0], dtype=jnp.float32)

    out2, feat2 = head_eeg_forward(x_eeg2, x_hyp, t, w_reg, b_reg)
    out2 = jax.block_until_ready(out2)
    feat2 = jax.block_until_ready(feat2)
    ref_out2, ref_feat2 = _reference(x_eeg2, w_reg, b_reg)
    assert out2.shape == (B, 1) and feat2.shape == (B, OUT_CHANS)
    assert jnp.allclose(out2, ref_out2, atol=1e-5, rtol=1e-5)
    assert jnp.allclose(feat2, ref_feat2, atol=1e-5, rtol=1e-5)

    # ----- Multi-step reduction path (tiled L, write-then-accumulate + finalize) -----
    Lb = 64
    x_eeg3 = jax.random.normal(k6, (B, Lb, EMBED_DIM), dtype=jnp.float32)
    out3, feat3 = head_eeg_forward(x_eeg3, x_hyp, t, w_dce, b_dce, tile_l=8)
    out3 = jax.block_until_ready(out3)
    feat3 = jax.block_until_ready(feat3)
    ref_out3, ref_feat3 = _reference(x_eeg3, w_dce, b_dce)
    assert out3.shape == (B, OUT_CHANS) and feat3.shape == (B, EMBED_DIM)
    assert jnp.allclose(out3, ref_out3, atol=1e-5, rtol=1e-5)
    assert jnp.allclose(feat3, ref_feat3, atol=1e-5, rtol=1e-5)

    print("KERNEL_OK")
</pallas_src>

<mosaic_0001>
module attributes {stable_mosaic.version = 11 : i64} {
  func.func @_head_eeg_kernel(%arg0: i32, %arg1: i32, %arg2: memref<2x8x32xf32, #tpu.memory_space<vmem>>, %arg3: memref<32x8xf32, #tpu.memory_space<vmem>>, %arg4: memref<1x8xf32, #tpu.memory_space<vmem>>, %arg5: memref<2x8xf32, #tpu.memory_space<vmem>>, %arg6: memref<2x32xf32, #tpu.memory_space<vmem>>, %arg7: memref<2x32xf32, #tpu.memory_space<vmem>>) attributes {dimension_semantics = [#tpu.dimension_semantics<parallel>, #tpu.dimension_semantics<arbitrary>], iteration_bounds = array<i64: 1, 1>, scalar_prefetch = 0 : i64, scratch_operands = 1 : i64, tpu.core_type = #tpu.core_type<tc>, window_params = [{transform_indices = @transform_0, window_bounds = array<i64: 2, 8, 32>}, {pipeline_mode = #tpu.pipeline_mode<synchronous>, transform_indices = @transform_1, window_bounds = array<i64: 32, 8>}, {pipeline_mode = #tpu.pipeline_mode<synchronous>, transform_indices = @transform_2, window_bounds = array<i64: 1, 8>}, {transform_indices = @transform_3, window_bounds = array<i64: 2, 8>}, {transform_indices = @transform_4, window_bounds = array<i64: 2, 32>}]} {
    %c0 = arith.constant 0 : index
    %c0_0 = arith.constant 0 : index
    %c0_1 = arith.constant 0 : index
    %0 = vector.load %arg2[%c0, %c0_0, %c0_1] : memref<2x8x32xf32, #tpu.memory_space<vmem>>, vector<2x8x32xf32>
    %cst = arith.constant dense<0.000000e+00> : vector<2x32xf32>
    %1 = vector.multi_reduction <add>, %0, %cst [1] : vector<2x8x32xf32> to vector<2x32xf32>
    %c0_i32 = arith.constant 0 : i32
    %2 = arith.cmpi eq, %arg1, %c0_i32 : i32
    %3 = arith.extui %2 : i1 to i32
    %c0_i32_2 = arith.constant 0 : i32
    %4 = arith.cmpi ne, %3, %c0_i32_2 : i32
    scf.if %4 {
      %c0_7 = arith.constant 0 : index
      %c0_8 = arith.constant 0 : index
      %11 = vector.load %arg7[%c0_7, %c0_8] : memref<2x32xf32, #tpu.memory_space<vmem>>, vector<2x32xf32>
      tpu.vector_store %arg7[%c0_7, %c0_8], %1 {strides = array<i32>} : memref<2x32xf32, #tpu.memory_space<vmem>>, vector<2x32xf32>,
    } else {
    }
    %c0_i32_3 = arith.constant 0 : i32
    %5 = arith.cmpi sgt, %arg1, %c0_i32_3 : i32
    %6 = arith.extui %5 : i1 to i32
    %c0_i32_4 = arith.constant 0 : i32
    %7 = arith.cmpi ne, %6, %c0_i32_4 : i32
    scf.if %7 {
      %c0_7 = arith.constant 0 : index
      %c0_8 = arith.constant 0 : index
      %11 = vector.load %arg7[%c0_7, %c0_8] : memref<2x32xf32, #tpu.memory_space<vmem>>, vector<2x32xf32>
      %12 = arith.addf %11, %1 : vector<2x32xf32>
      %c0_9 = arith.constant 0 : index
      %c0_10 = arith.constant 0 : index
      %13 = vector.load %arg7[%c0_9, %c0_10] : memref<2x32xf32, #tpu.memory_space<vmem>>, vector<2x32xf32>
      tpu.vector_store %arg7[%c0_9, %c0_10], %12 {strides = array<i32>} : memref<2x32xf32, #tpu.memory_space<vmem>>, vector<2x32xf32>,
    } else {
    }
    %c0_i32_5 = arith.constant 0 : i32
    %8 = arith.cmpi eq, %arg1, %c0_i32_5 : i32
    %9 = arith.extui %8 : i1 to i32
    %c0_i32_6 = arith.constant 0 : i32
    %10 = arith.cmpi ne, %9, %c0_i32_6 : i32
    scf.if %10 {
      %c0_7 = arith.constant 0 : index
      %c0_8 = arith.constant 0 : index
      %11 = vector.load %arg7[%c0_7, %c0_8] : memref<2x32xf32, #tpu.memory_space<vmem>>, vector<2x32xf32>
      %cst_9 = arith.constant 1.250000e-01 : f32
      %12 = vector.broadcast %cst_9 : f32 to vector<2x32xf32>
      %13 = arith.mulf %11, %12 : vector<2x32xf32>
      %c0_10 = arith.constant 0 : index
      %c0_11 = arith.constant 0 : index
      %14 = vector.load %arg3[%c0_10, %c0_11] : memref<32x8xf32, #tpu.memory_space<vmem>>, vector<32x8xf32>
      %cst_12 = arith.constant dense<0.000000e+00> : vector<2x8xf32>
      %15 = tpu.matmul %13, %14, %cst_12 {dimension_numbers = #tpu.dot_dimension_numbers<[1], [0], [0], [1], [0, 0, 1, 1], [], []>} : vector<2x32xf32>, vector<32x8xf32>, vector<2x8xf32> -> vector<2x8xf32>
      %c0_13 = arith.constant 0 : index
      %c0_14 = arith.constant 0 : index
      %16 = vector.load %arg4[%c0_13, %c0_14] : memref<1x8xf32, #tpu.memory_space<vmem>>, vector<1x8xf32>
      %17 = vector.broadcast %16 : vector<1x8xf32> to vector<2x8xf32>
      %18 = arith.addf %15, %17 : vector<2x8xf32>
      %c0_15 = arith.constant 0 : index
      %c0_16 = arith.constant 0 : index
      %19 = vector.load %arg5[%c0_15, %c0_16] : memref<2x8xf32, #tpu.memory_space<vmem>>, vector<2x8xf32>
      tpu.vector_store %arg5[%c0_15, %c0_16], %18 {strides = array<i32>} : memref<2x8xf32, #tpu.memory_space<vmem>>, vector<2x8xf32>,
      %c0_17 = arith.constant 0 : index
      %c0_18 = arith.constant 0 : index
      %20 = vector.load %arg6[%c0_17, %c0_18] : memref<2x32xf32, #tpu.memory_space<vmem>>, vector<2x32xf32>
      tpu.vector_store %arg6[%c0_17, %c0_18], %13 {strides = array<i32>} : memref<2x32xf32, #tpu.memory_space<vmem>>, vector<2x32xf32>,
    } else {
    }
    return
  }
  func.func @transform_0(%arg0: i32, %arg1: i32) -> (i32, i32, i32) {
    %c0_i32 = arith.constant 0 : i32
    %c0_i32_0 = arith.constant 0 : i32
    return %arg0, %arg1, %c0_i32 : i32, i32, i32
  }
  func.func @transform_1(%arg0: i32, %arg1: i32) -> (i32, i32) {
    %c0_i32 = arith.constant 0 : i32
    %c0_i32_0 = arith.constant 0 : i32
    %c0_i32_1 = arith.constant 0 : i32
    return %c0_i32, %c0_i32_0 : i32, i32
  }
  func.func @transform_2(%arg0: i32, %arg1: i32) -> (i32, i32) {
    %c0_i32 = arith.constant 0 : i32
    %c0_i32_0 = arith.constant 0 : i32
    %c0_i32_1 = arith.constant 0 : i32
    return %c0_i32, %c0_i32_0 : i32, i32
  }
  func.func @transform_3(%arg0: i32, %arg1: i32) -> (i32, i32) {
    %c0_i32 = arith.constant 0 : i32
    %c0_i32_0 = arith.constant 0 : i32
    return %arg0, %c0_i32 : i32, i32
  }
  func.func @transform_4(%arg0: i32, %arg1: i32) -> (i32, i32) {
    %c0_i32 = arith.constant 0 : i32
    %c0_i32_0 = arith.constant 0 : i32
    return %arg0, %c0_i32 : i32, i32
  }
}

</mosaic_0001>

<llo_original>
// kernel: head_eeg_forward.1
$region0: #{head_eeg_forward.1}
  #allocation0 [shape = 'u32[]', space=smem, size = 0x4, offset = 0x4, fixed_abs, tag = 'smem constant byte address 0x4 - core index']
  #allocation1 [shape = 'u32[144,128]{1,0:T(1,128)}', space=vmem, size = 0x12000, scoped, tag = 'internal scratch']
  #allocation2 [shape = 'f32[2,32]{1,0:T(2,128)}', space=vmem, size = 0x400, scoped, tag = 'scratch operand']
  %s0 = inlined_call_operand.hbm [shape: f32[2,8,32], index: 0, kind: input, shape index: {}]
  %s1 = inlined_call_operand.hbm [shape: f32[32,8], index: 1, kind: input, shape index: {}]
  %s2 = inlined_call_operand.hbm [shape: f32[1,8], index: 2, kind: input, shape index: {}]
  %s3 = inlined_call_operand.hbm [shape: f32[2,8], index: 3, kind: output, shape index: {0}]
  %s4 = inlined_call_operand.hbm [shape: f32[2,32], index: 4, kind: output, shape index: {1}]
  %5 = xla_tuple %s3, %s4
  %s6 = sld [smem:[#allocation0]]
  $region54: #{head_eeg_forward.1} parent=0
    _
  %s8 = ssub.s32 1, %s6
  %s9 = scalar_select 0, %s8, %s6
  $region1: #{head_eeg_forward.1} parent=0
    #allocation3 [shape = 'u8[8192]{0}', space=vmem, size = 0x2000, scoped, tag = 'input window, operand 0, single buffered']
    #allocation4 [shape = 's32[1]{0}', space=sflag, size = 0x4, scoped, tag = 'scoped memory for head_eeg_forward.1']
    #allocation5 [shape = 's32[1]{0}', space=sflag, size = 0x4, scoped, tag = 'scoped memory for head_eeg_forward.1']
    #allocation6 [shape = 'u8[16384]{0}', space=vmem, size = 0x4000, scoped, tag = 'input window, operand 1, single buffered']
    #allocation7 [shape = 's32[1]{0}', space=sflag, size = 0x4, scoped, tag = 'scoped memory for head_eeg_forward.1']
    #allocation8 [shape = 'u8[512]{0}', space=vmem, size = 0x400, scoped, tag = 'input window, operand 2, single buffered']
    #allocation9 [shape = 'u8[1024]{0}', space=vmem, size = 0x400, scoped, tag = 'output window, operand 0, single buffered']
    #allocation10 [shape = 'u8[1024]{0}', space=vmem, size = 0x400, scoped, tag = 'output window, operand 1, single buffered']
    #allocation11 [shape = 's32[1]{0}', space=sflag, size = 0x4, scoped, tag = 'scoped memory for head_eeg_forward.1']
    %10 = vsyncpa [#allocation4], 0
    %11 = vsyncpa [#allocation7], 0
    %12 = vsyncpa [#allocation5], 0
    %13 = vsyncpa [#allocation11], 0
    // Predicated region
    $region2: #{head_eeg_forward.1} parent=1 // pred_check
      _
    $region3: #{head_eeg_forward.1} parent=1 // pred_check_branch
      %15 = sbr.rel (0) target = $region5
    $region4: #{head_eeg_forward.1} parent=1 // pred_region
      %s17 = ssub.s32 256, 256
      %18 = vsyncadd [#allocation4], %s17
      %s19 = sshll.u32 [#allocation3], 4
      %s20 = int_to_ptr.vmem [resolvable:$true] %s19
      %25 = dma.hbm_to_vmem [thread:$0]  %s0, 256, %s20, [#allocation4], 128, 128, 8
    $region5: #{head_eeg_forward.1} parent=1 // pred_fallthru
      _
    // Predicated region
    $region6: #{head_eeg_forward.1} parent=1 // pred_check
      _
    $region7: #{head_eeg_forward.1} parent=1 // pred_check_branch
      %27 = sbr.rel (0) target = $region9
    $region8: #{head_eeg_forward.1} parent=1 // pred_region
      %s29 = ssub.s32 512, 512
      %30 = vsyncadd [#allocation7], %s29
      %s31 = sshll.u32 [#allocation6], 4
      %s32 = int_to_ptr.vmem [resolvable:$true] %s31
      %37 = dma.hbm_to_vmem [thread:$0]  %s1, 512, %s32, [#allocation7], 128, 128, 8
    $region9: #{head_eeg_forward.1} parent=1 // pred_fallthru
      _
    // Predicated region
    $region10: #{head_eeg_forward.1} parent=1 // pred_check
      _
    $region11: #{head_eeg_forward.1} parent=1 // pred_check_branch
      %39 = sbr.rel (0) target = $region13
    $region12: #{head_eeg_forward.1} parent=1 // pred_region
      %s41 = ssub.s32 16, 16
      %42 = vsyncadd [#allocation7], %s41
      %s44 = sshll.u32 [#allocation8], 4
      %s45 = int_to_ptr.vmem [resolvable:$true] %s44
      %47 = dma.hbm_to_vmem [thread:$0]  %s2, 16, %s45, [#allocation7]
    $region13: #{head_eeg_forward.1} parent=1 // pred_fallthru
      _
    // Predicated region
    $region14: #{head_eeg_forward.1} parent=1 // pred_check
      _
    $region15: #{head_eeg_forward.1} parent=1 // pred_check_branch
      %49 = sbr.rel (0) target = $region17
    $region16: #{head_eeg_forward.1} parent=1 // pred_region
      %50 = dma.done [#allocation4], 256
    $region17: #{head_eeg_forward.1} parent=1 // pred_fallthru
      _
    // Predicated region
    $region18: #{head_eeg_forward.1} parent=1 // pred_check
      _
    $region19: #{head_eeg_forward.1} parent=1 // pred_check_branch
      %52 = sbr.rel (0) target = $region21
    $region20: #{head_eeg_forward.1} parent=1 // pred_region
      %53 = dma.done [#allocation7], 512
    $region21: #{head_eeg_forward.1} parent=1 // pred_fallthru
      _
    // Predicated region
    $region22: #{head_eeg_forward.1} parent=1 // pred_check
      _
    $region23: #{head_eeg_forward.1} parent=1 // pred_check_branch
      %55 = sbr.rel (0) target = $region25
    $region24: #{head_eeg_forward.1} parent=1 // pred_region
      %56 = dma.done [#allocation7], 16
    $region25: #{head_eeg_forward.1} parent=1 // pred_fallthru
      _
    %v57 = vld [vmem:[#allocation3] sm:$0xff]
    %v58 = vld [vmem:[#allocation3 + $0x8] sm:$0xff]
    %vm59 = vcmask 261120
    %v60 = vsel %vm59, %v57, 0.0
    %v61 = vrot.slane %v60, 4
    %v62 = vadd.f32 %v60, %v61
    %v63 = vrot.slane %v62, 2
    %v64 = vadd.f32 %v62, %v63
    %v65 = vrot.slane %v64, 1
    %v66 = vadd.f32 %v64, %v65
    %v67 = vsel %vm59, %v58, 0.0
    %v68 = vrot.slane %v67, 4
    %v69 = vadd.f32 %v67, %v68
    %v70 = vrot.slane %v69, 2
    %v71 = vadd.f32 %v69, %v70
    %v72 = vrot.slane %v71, 1
    %v73 = vadd.f32 %v71, %v72
    %p74 = scmp.eq.s32.totalorder 0, 0
    // Predicated region
    $region26: #{head_eeg_forward.1} parent=1 // pred_check
      %p75 = pneg %p74
    $region27: #{head_eeg_forward.1} parent=1 // pred_check_branch
      %77 = sbr.rel (%p75) target = $region29
    $region28: #{head_eeg_forward.1} parent=1 // pred_region
      %vm80 = vcmask 1041409
      %v81 = vsel %vm80, %v73, %v66
      %vm83 = vcmask 254976
      %84 = vst.msk [vmem:[#allocation2] sm:$0x3] %vm83, %v81
    $region29: #{head_eeg_forward.1} parent=1 // pred_fallthru
      _
    %p85 = scmp.gt.s32.totalorder 0, 0
    // Predicated region
    $region30: #{head_eeg_forward.1} parent=1 // pred_check
      %p86 = pneg %p85
    $region31: #{head_eeg_forward.1} parent=1 // pred_check_branch
      %88 = sbr.rel (%p86) target = $region33
    $region32: #{head_eeg_forward.1} parent=1 // pred_region
      %v89 = vld [vmem:[#allocation2] sm:$0x3]
      %vm92 = vcmask 1041409
      %v93 = vsel %vm92, %v73, %v66
      %v95 = vadd.f32 %v89, %v93
      %vm96 = vcmask 254976
      %97 = vst.msk [vmem:[#allocation2] sm:$0x3] %vm96, %v95
    $region33: #{head_eeg_forward.1} parent=1 // pred_fallthru
      _
    // Predicated region
    $region34: #{head_eeg_forward.1} parent=1 // pred_check
      %p98 = pneg %p74
    $region35: #{head_eeg_forward.1} parent=1 // pred_check_branch
      %100 = sbr.rel (%p98) target = $region37
    $region36: #{head_eeg_forward.1} parent=1 // pred_region
      %v101 = vld [vmem:[#allocation2] sm:$0x3]
      %v102 = vmul.f32 %v101, 0.125
      %v103 = vld [vmem:[#allocation6] sm:$0xff]
      %v104 = vld [vmem:[#allocation6 + $0x8] sm:$0xff]
      %v105 = vld [vmem:[#allocation6 + $0x10] sm:$0xff]
      %v106 = vld [vmem:[#allocation6 + $0x18] sm:$0xff]
      %v107 = vld [vmem:[#allocation8] sm:$0x1]
      %v109 = vlaneseq
      %v110 = vshrl.u32 %v109, 7
      %v111 = vsub.s32 0, %v110
      %v112 = vrot.slane %v107, %v111
      %v115 = vsel %vm59, %v102, 0
      %117 = vmatprep.subr.mxu0 0.0
      %118 = vmatpush1.msra.mxu0 %v103
      %119 = vmatprep.subr.mxu0 0.0
      %120 = vmatpush1.msra.mxu0 %v104
      %121 = vmatprep.subr.mxu0 0.0
      %122 = vmatpush1.msra.mxu0 %v105
      %123 = vmatprep.subr.mxu0 0.0
      %124 = vmatpush1.msra.mxu0 %v106
      %125 = vmatprep.subr.mxu0 0.0
      %126 = vmatpush1.msra.mxu0 0.0
      %127 = vmatprep.subr.mxu0 0.0
      %128 = vmatpush1.msra.mxu0 0.0
      %129 = vmatprep.subr.mxu0 0.0
      %130 = vmatpush1.msra.mxu0 0.0
      %131 = vmatprep.subr.mxu0 0.0
      %132 = vmatpush1.msra.mxu0 0.0
      %133 = vmatprep.subr.mxu0 0.0
      %134 = vmatpush1.msra.mxu0 0.0
      %135 = vmatprep.subr.mxu0 0.0
      %136 = vmatpush1.msra.mxu0 0.0
      %137 = vmatprep.subr.mxu0 0.0
      %138 = vmatpush1.msra.mxu0 0.0
      %139 = vmatprep.subr.mxu0 0.0
      %140 = vmatpush1.msra.mxu0 0.0
      %141 = vmatprep.subr.mxu0 0.0
      %142 = vmatpush1.msra.mxu0 0.0
      %143 = vmatprep.subr.mxu0 0.0
      %144 = vmatpush1.msra.mxu0 0.0
      %145 = vmatprep.subr.mxu0 0.0
      %146 = vmatpush1.msra.mxu0 0.0
      %147 = vmatprep.subr.mxu0 0.0
      %148 = vmatpush1.msra.mxu0 0.0
      %149 = vmatprep.subr.mxu0 0.0
      %150 = vmatpush1.msra.mxu0 0.0
      %151 = vmatprep.subr.mxu0 0.0
      %152 = vmatpush1.msra.mxu0 0.0
      %153 = vmatprep.subr.mxu0 0.0
      %154 = vmatpush1.msra.mxu0 0.0
      %155 = vmatprep.subr.mxu0 0.0
      %156 = vmatpush1.msra.mxu0 0.0
      %157 = vmatprep.subr.mxu0 0.0
      %158 = vmatpush1.msra.mxu0 0.0
      %159 = vmatprep.subr.mxu0 0.0
      %160 = vmatpush1.msra.mxu0 0.0
      %161 = vmatprep.subr.mxu0 0.0
      %162 = vmatpush1.msra.mxu0 0.0
      %163 = vmatprep.subr.mxu0 0.0
      %164 = vmatpush1.msra.mxu0 0.0
      %165 = vmatprep.subr.mxu0 0.0
      %166 = vmatpush1.msra.mxu0 0.0
      %167 = vmatprep.subr.mxu0 0.0
      %168 = vmatpush1.msra.mxu0 0.0
      %169 = vmatprep.subr.mxu0 0.0
      %170 = vmatpush1.msra.mxu0 0.0
      %171 = vmatprep.subr.mxu0 0.0
      %172 = vmatpush1.msra.mxu0 0.0
      %173 = vmatprep.subr.mxu0 0.0
      %174 = vmatpush1.msra.mxu0 0.0
      %175 = vmatprep.subr.mxu0 0.0
      %176 = vmatpush1.msra.mxu0 0.0
      %177 = vmatprep.subr.mxu0 0.0
      %178 = vmatpush1.msra.mxu0 0.0
      %179 = vmatprep.subr.mxu0 0.0
      %180 = vmatpush1.msra.mxu0 0.0
      %181 = vmatprep.mubr.f32.mxu0 0.0
      %182 = vmatmul.mubr.f32.gmra.mrb[0].mxu0 %v115
      %v183 = vpop.f32.mrb[0].mxu0
      %v184 = vadd.f32 %v112, %v183
      %v185 = vpop.f32.mrb[0].mxu0
      %186 = vdwg.mxu0
      %vm187 = vcmask 58368
      %188 = vst.msk [vmem:[#allocation9] sm:$0x3] %vm187, %v184
      %vm189 = vcmask 254976
      %190 = vst.msk [vmem:[#allocation10] sm:$0x3] %vm189, %v102
    $region37: #{head_eeg_forward.1} parent=1 // pred_fallthru
      _
    // Predicated region
    $region38: #{head_eeg_forward.1} parent=1 // pred_check
      _
    $region39: #{head_eeg_forward.1} parent=1 // pred_check_branch
      %192 = sbr.rel (0) target = $region41
    $region40: #{head_eeg_forward.1} parent=1 // pred_region
      %s194 = ssub.s32 32, 32
      %195 = vsyncadd [#allocation5], %s194
      %s197 = sshll.u32 [#allocation9], 4
      %s198 = int_to_ptr.vmem [resolvable:$true] %s197
      %200 = dma.vmem_to_hbm [thread:$0]  %s198, 32, %s3, [#allocation5]
    $region41: #{head_eeg_forward.1} parent=1 // pred_fallthru
      _
    // Predicated region
    $region42: #{head_eeg_forward.1} parent=1 // pred_check
      _
    $region43: #{head_eeg_forward.1} parent=1 // pred_check_branch
      %202 = sbr.rel (0) target = $region45
    $region44: #{head_eeg_forward.1} parent=1 // pred_region
      %s204 = ssub.s32 32, 32
      %205 = vsyncadd [#allocation11], %s204
      %s207 = sshll.u32 [#allocation10], 4
      %s208 = int_to_ptr.vmem [resolvable:$true] %s207
      %210 = dma.vmem_to_hbm [thread:$0]  %s208, 32, %s4, [#allocation11]
    $region45: #{head_eeg_forward.1} parent=1 // pred_fallthru
      _
    // Predicated region
    $region46: #{head_eeg_forward.1} parent=1 // pred_check
      _
    $region47: #{head_eeg_forward.1} parent=1 // pred_check_branch
      %212 = sbr.rel (0) target = $region49
    $region48: #{head_eeg_forward.1} parent=1 // pred_region
      %213 = dma.done [#allocation5], 32
    $region49: #{head_eeg_forward.1} parent=1 // pred_fallthru
      _
    // Predicated region
    $region50: #{head_eeg_forward.1} parent=1 // pred_check
      _
    $region51: #{head_eeg_forward.1} parent=1 // pred_check_branch
      %215 = sbr.rel (0) target = $region53
    $region52: #{head_eeg_forward.1} parent=1 // pred_region
      %216 = dma.done [#allocation11], 32
    $region53: #{head_eeg_forward.1} parent=1 // pred_fallthru
      _
    %217 = vsyncpa [#allocation4], 1
    %218 = vsyncpa [#allocation7], 1
    %219 = vsyncpa [#allocation5], 1
    %220 = vsyncpa [#allocation11], 1

</llo_original>
